<compile_context>
chip_gen: v6e
topology: v6e:2x2x1
jax: 0.10.0
libtpu: 0.0.40
codegen_flags: <defaults>
</compile_context>

<pallas_src>
import jax
import jax.numpy as jnp
from jax import lax
from jax.experimental import pallas as pl
from jax.experimental.pallas import tpu as pltpu

_LANE = 128


def _cdiv(a, b):
    return -(-a // b)


def _ceil_to(n, m):
    return _cdiv(n, m) * m


def _floor_to(n, m):
    return (n // m) * m


def _vmem_capacity_bytes():
    """Physical VMEM of the current TPU generation (conservative fallback)."""
    try:
        cap = getattr(pltpu.get_tpu_info(), "vmem_capacity_bytes", None)
        if cap:
            return int(cap)
    except Exception:
        pass
    return 64 << 20          # v7x per-TensorCore VMEM (smallest of the three)


def _fbankaug_kernel(p_ref, x_ref, o_ref):
    """p_ref: SMEM (4, B) int32, rows = [t_pos, t_len, f_pos, f_len].
    x_ref / o_ref: VMEM (Bt, F, tT) blocks of the (B, F, T) input / output."""
    Bt, F_blk, T_blk = x_ref.shape
    B = p_ref.shape[1]
    b0 = pl.program_id(0) * Bt
    t0 = pl.program_id(1) * T_blk

    # Reduced-shape iotas; the only full (F, tT) work per row is OR + select.
    t_idx = t0 + lax.broadcasted_iota(jnp.int32, (1, T_blk), 1)   # (1, tT)
    f_idx = lax.broadcasted_iota(jnp.int32, (F_blk, 1), 0)        # (F, 1)
    zero = jnp.zeros((), x_ref.dtype)

    for r in range(Bt):                          # static unroll, Bt <= 8
        # Clamp for the ragged batch tail; those rows are never written back.
        b = jnp.minimum(b0 + r, B - 1)
        t_pos = p_ref[0, b]
        t_len = p_ref[1, b]
        f_pos = p_ref[2, b]
        f_len = p_ref[3, b]
        tmask = (t_idx >= t_pos) & (t_idx < t_pos + t_len)        # (1, tT)
        fmask = (f_idx >= f_pos) & (f_idx < f_pos + f_len)        # (F, 1)
        o_ref[r] = jnp.where(tmask | fmask, zero, x_ref[r])


def fbank_aug(x, params):
    """SpecAugment-style masking (FbankAug.forward).

    x:      (B, F, T) array  (batch, fea, time).
    params: (B, 4) int32 = [t_pos, t_len, f_pos, f_len] per batch row.
    Zeroes the union of the per-row time span and freq span — equivalent to
    the sequential in-place time- then freq-masking of the PyTorch module.
    """
    B, F_, T_ = x.shape
    itemsize = jnp.dtype(x.dtype).itemsize

    # ---- generation-aware block sizing ------------------------------------
    vmem_cap = _vmem_capacity_bytes()
    block_cap = (4 << 20) if vmem_cap <= (64 << 20) else (8 << 20)

    # Time tile: the full axis when it fits, else a large multiple of 128.
    tT = T_ if T_ <= 2048 else 2048
    Bt = min(B, 8)

    def _bytes(bt, tt):
        return bt * F_ * tt * itemsize

    # Fit the per-block cap: shrink Bt first (keeps HBM rows long), then tT.
    while Bt > 1 and _bytes(Bt, tT) > block_cap:
        Bt //= 2
    while tT > _LANE and _bytes(Bt, tT) > block_cap:
        tT = max(_LANE, _floor_to(tT // 2, _LANE))

    # Megacore: guarantee >= 2 grid steps so both v7x TensorCores get work.
    if _cdiv(B, Bt) * _cdiv(T_, tT) < 2:
        if T_ > _LANE:
            tT = min(tT, _ceil_to(_cdiv(T_, 2), _LANE))
        elif B > 1:
            Bt = _cdiv(B, 2)

    grid = (_cdiv(B, Bt), _cdiv(T_, tT))
    # Invariant: tT is either == T_ (full dim) or a multiple of 128 that is
    # < T_; F is always the full dim -> the (8,128) block rule holds for every
    # dtype (f32 / bf16 / ...), and every interior store is lane-dense.
    x_spec = pl.BlockSpec((Bt, F_, tT), lambda bi, ti, p: (bi, 0, ti))

    block_bytes = _bytes(Bt, tT)
    # Double-buffered input + output blocks, plus headroom.
    vmem_limit = max(16 << 20, 4 * block_bytes + (4 << 20))
    vmem_limit = int(min(vmem_limit, max(vmem_cap - (8 << 20), 16 << 20)))

    # (4, B): long axis last keeps the padded SMEM footprint small.
    params_t = jnp.transpose(params.astype(jnp.int32))

    return pl.pallas_call(
        _fbankaug_kernel,
        out_shape=jax.ShapeDtypeStruct((B, F_, T_), x.dtype),
        grid_spec=pltpu.PrefetchScalarGridSpec(
            num_scalar_prefetch=1,      # params land in SMEM: no per-step DMA
            grid=grid,
            in_specs=[x_spec],
            out_specs=x_spec),
        compiler_params=pltpu.CompilerParams(
            dimension_semantics=("parallel", "parallel"),
            vmem_limit_bytes=vmem_limit),
    )(params_t, x)


def sample_mask_params(key, batch, fea, time,
                       freq_mask_width=(0, 8), time_mask_width=(0, 10)):
    """Mirrors the torch.randint sampling in FbankAug.mask_along_axis.

    jit-safe: the mask-position upper bound uses the static maximum mask
    length (width[1]-1) instead of the data-dependent mask_len.max() the
    PyTorch code uses (the RNG stream differs from torch anyway)."""
    k_tlen, k_tpos, k_flen, k_fpos = jax.random.split(key, 4)

    # dim=2 (time) mask
    t_len = jax.random.randint(k_tlen, (batch,), time_mask_width[0],
                               time_mask_width[1], dtype=jnp.int32)
    t_hi = max(1, time - (time_mask_width[1] - 1))
    t_pos = jax.random.randint(k_tpos, (batch,), 0, t_hi, dtype=jnp.int32)

    # dim=1 (freq) mask
    f_len = jax.random.randint(k_flen, (batch,), freq_mask_width[0],
                               freq_mask_width[1], dtype=jnp.int32)
    f_hi = max(1, fea - (freq_mask_width[1] - 1))
    f_pos = jax.random.randint(k_fpos, (batch,), 0, f_hi, dtype=jnp.int32)

    return jnp.stack([t_pos, t_len, f_pos, f_len], axis=1)  # (B, 4) int32


def fbank_aug_ref(x, params):
    """Pure-JAX reference of the masking math."""
    B, F_, T_ = x.shape
    t_pos = params[:, 0][:, None, None]
    t_len = params[:, 1][:, None, None]
    f_pos = params[:, 2][:, None, None]
    f_len = params[:, 3][:, None, None]
    t_idx = jnp.arange(T_)[None, None, :]
    f_idx = jnp.arange(F_)[None, :, None]
    mask = ((t_idx >= t_pos) & (t_idx < t_pos + t_len)) | \
           ((f_idx >= f_pos) & (f_idx < f_pos + f_len))
    return jnp.where(mask, 0.0, x)


if __name__ == "__main__":
    key = jax.random.PRNGKey(0)
    fbank_aug_jit = jax.jit(fbank_aug)

    cases = [
        ((4, 16, 200), jnp.float32),    # time split into 2 tiles (ragged tail)
        ((12, 20, 300), jnp.float32),   # ragged batch tiles (Bt=8 over B=12)
        ((6, 24, 160), jnp.bfloat16),   # bf16 I/O path (half the HBM bytes)
    ]
    for (B, F_, T_), dt in cases:
        k1, k2, key = jax.random.split(key, 3)
        x = jax.random.normal(k1, (B, F_, T_), dtype=jnp.float32).astype(dt)
        params = sample_mask_params(k2, B, F_, T_)
        ref = fbank_aug_ref(x, params)
        out = jax.block_until_ready(fbank_aug_jit(x, params))
        assert out.shape == x.shape and out.dtype == x.dtype
        assert jnp.allclose(out.astype(jnp.float32), ref.astype(jnp.float32)), \
            f"mismatch vs reference for shape {(B, F_, T_)} dtype {dt}"

    print("KERNEL_OK")
</pallas_src>

<mosaic_0001>
module attributes {stable_mosaic.version = 11 : i64} {
  func.func @_fbankaug_kernel(%arg0: i32, %arg1: i32, %arg2: memref<4x4xi32, #tpu.memory_space<smem>>, %arg3: memref<4x16x128xf32, #tpu.memory_space<vmem>>, %arg4: memref<4x16x128xf32, #tpu.memory_space<vmem>>) attributes {dimension_semantics = [#tpu.dimension_semantics<parallel>, #tpu.dimension_semantics<parallel>], iteration_bounds = array<i64: 1, 2>, scalar_prefetch = 1 : i64, scratch_operands = 0 : i64, tpu.core_type = #tpu.core_type<tc>, window_params = [{transform_indices = @transform_0, window_bounds = array<i64: 4, 16, 128>}, {transform_indices = @transform_1, window_bounds = array<i64: 4, 16, 128>}]} {
    %c4_i32 = arith.constant 4 : i32
    %0 = arith.muli %arg0, %c4_i32 : i32
    %c128_i32 = arith.constant 128 : i32
    %1 = arith.muli %arg1, %c128_i32 : i32
    %2 = tpu.iota {dimensions = array<i32: 1>} : vector<1x128xi32>
    %3 = vector.broadcast %1 : i32 to vector<1x128xi32>
    %4 = arith.addi %3, %2 : vector<1x128xi32>
    %5 = tpu.iota {dimensions = array<i32: 0>} : vector<16x1xi32>
    %c0_i32 = arith.constant 0 : i32
    %6 = arith.addi %0, %c0_i32 : i32
    %c3_i32 = arith.constant 3 : i32
    %7 = arith.minsi %6, %c3_i32 : i32
    %c0 = arith.constant 0 : index
    %8 = arith.index_cast %7 : i32 to index
    %9 = memref.load %arg2[%c0, %8] : memref<4x4xi32, #tpu.memory_space<smem>>
    %c1 = arith.constant 1 : index
    %10 = arith.index_cast %7 : i32 to index
    %11 = memref.load %arg2[%c1, %10] : memref<4x4xi32, #tpu.memory_space<smem>>
    %c2 = arith.constant 2 : index
    %12 = arith.index_cast %7 : i32 to index
    %13 = memref.load %arg2[%c2, %12] : memref<4x4xi32, #tpu.memory_space<smem>>
    %c3 = arith.constant 3 : index
    %14 = arith.index_cast %7 : i32 to index
    %15 = memref.load %arg2[%c3, %14] : memref<4x4xi32, #tpu.memory_space<smem>>
    %16 = vector.broadcast %9 : i32 to vector<1x128xi32>
    %17 = arith.cmpi sge, %4, %16 : vector<1x128xi32>
    %18 = arith.addi %9, %11 : i32
    %19 = vector.broadcast %18 : i32 to vector<1x128xi32>
    %20 = arith.cmpi slt, %4, %19 : vector<1x128xi32>
    %21 = arith.andi %17, %20 : vector<1x128xi1>
    %22 = vector.broadcast %13 : i32 to vector<16x1xi32>
    %23 = arith.cmpi sge, %5, %22 : vector<16x1xi32>
    %24 = arith.addi %13, %15 : i32
    %25 = vector.broadcast %24 : i32 to vector<16x1xi32>
    %26 = arith.cmpi slt, %5, %25 : vector<16x1xi32>
    %27 = arith.andi %23, %26 : vector<16x1xi1>
    %28 = vector.broadcast %21 : vector<1x128xi1> to vector<16x128xi1>
    %29 = vector.broadcast %27 : vector<16x1xi1> to vector<16x128xi1>
    %30 = arith.ori %28, %29 : vector<16x128xi1>
    %c0_0 = arith.constant 0 : index
    %c0_1 = arith.constant 0 : index
    %c0_2 = arith.constant 0 : index
    %31 = vector.load %arg3[%c0_0, %c0_1, %c0_2] : memref<4x16x128xf32, #tpu.memory_space<vmem>>, vector<1x16x128xf32>
    %32 = vector.shape_cast %31 : vector<1x16x128xf32> to vector<16x128xf32>
    %cst = arith.constant 0.000000e+00 : f32
    %33 = vector.broadcast %cst : f32 to vector<16x128xf32>
    %34 = arith.select %30, %33, %32 : vector<16x128xi1>, vector<16x128xf32>
    %c0_3 = arith.constant 0 : index
    %c0_4 = arith.constant 0 : index
    %c0_5 = arith.constant 0 : index
    %35 = vector.load %arg4[%c0_3, %c0_4, %c0_5] : memref<4x16x128xf32, #tpu.memory_space<vmem>>, vector<1x16x128xf32>
    %36 = vector.shape_cast %35 : vector<1x16x128xf32> to vector<16x128xf32>
    %37 = vector.shape_cast %34 : vector<16x128xf32> to vector<1x16x128xf32>
    tpu.vector_store %arg4[%c0_3, %c0_4, %c0_5], %37 {strides = array<i32>} : memref<4x16x128xf32, #tpu.memory_space<vmem>>, vector<1x16x128xf32>,
    %c1_i32 = arith.constant 1 : i32
    %38 = arith.addi %0, %c1_i32 : i32
    %c3_i32_6 = arith.constant 3 : i32
    %39 = arith.minsi %38, %c3_i32_6 : i32
    %c0_7 = arith.constant 0 : index
    %40 = arith.index_cast %39 : i32 to index
    %41 = memref.load %arg2[%c0_7, %40] : memref<4x4xi32, #tpu.memory_space<smem>>
    %c1_8 = arith.constant 1 : index
    %42 = arith.index_cast %39 : i32 to index
    %43 = memref.load %arg2[%c1_8, %42] : memref<4x4xi32, #tpu.memory_space<smem>>
    %c2_9 = arith.constant 2 : index
    %44 = arith.index_cast %39 : i32 to index
    %45 = memref.load %arg2[%c2_9, %44] : memref<4x4xi32, #tpu.memory_space<smem>>
    %c3_10 = arith.constant 3 : index
    %46 = arith.index_cast %39 : i32 to index
    %47 = memref.load %arg2[%c3_10, %46] : memref<4x4xi32, #tpu.memory_space<smem>>
    %48 = vector.broadcast %41 : i32 to vector<1x128xi32>
    %49 = arith.cmpi sge, %4, %48 : vector<1x128xi32>
    %50 = arith.addi %41, %43 : i32
    %51 = vector.broadcast %50 : i32 to vector<1x128xi32>
    %52 = arith.cmpi slt, %4, %51 : vector<1x128xi32>
    %53 = arith.andi %49, %52 : vector<1x128xi1>
    %54 = vector.broadcast %45 : i32 to vector<16x1xi32>
    %55 = arith.cmpi sge, %5, %54 : vector<16x1xi32>
    %56 = arith.addi %45, %47 : i32
    %57 = vector.broadcast %56 : i32 to vector<16x1xi32>
    %58 = arith.cmpi slt, %5, %57 : vector<16x1xi32>
    %59 = arith.andi %55, %58 : vector<16x1xi1>
    %60 = vector.broadcast %53 : vector<1x128xi1> to vector<16x128xi1>
    %61 = vector.broadcast %59 : vector<16x1xi1> to vector<16x128xi1>
    %62 = arith.ori %60, %61 : vector<16x128xi1>
    %c1_11 = arith.constant 1 : index
    %c0_12 = arith.constant 0 : index
    %c0_13 = arith.constant 0 : index
    %63 = vector.load %arg3[%c1_11, %c0_12, %c0_13] : memref<4x16x128xf32, #tpu.memory_space<vmem>>, vector<1x16x128xf32>
    %64 = vector.shape_cast %63 : vector<1x16x128xf32> to vector<16x128xf32>
    %cst_14 = arith.constant 0.000000e+00 : f32
    %65 = vector.broadcast %cst_14 : f32 to vector<16x128xf32>
    %66 = arith.select %62, %65, %64 : vector<16x128xi1>, vector<16x128xf32>
    %c1_15 = arith.constant 1 : index
    %c0_16 = arith.constant 0 : index
    %c0_17 = arith.constant 0 : index
    %67 = vector.load %arg4[%c1_15, %c0_16, %c0_17] : memref<4x16x128xf32, #tpu.memory_space<vmem>>, vector<1x16x128xf32>
    %68 = vector.shape_cast %67 : vector<1x16x128xf32> to vector<16x128xf32>
    %69 = vector.shape_cast %66 : vector<16x128xf32> to vector<1x16x128xf32>
    tpu.vector_store %arg4[%c1_15, %c0_16, %c0_17], %69 {strides = array<i32>} : memref<4x16x128xf32, #tpu.memory_space<vmem>>, vector<1x16x128xf32>,
    %c2_i32 = arith.constant 2 : i32
    %70 = arith.addi %0, %c2_i32 : i32
    %c3_i32_18 = arith.constant 3 : i32
    %71 = arith.minsi %70, %c3_i32_18 : i32
    %c0_19 = arith.constant 0 : index
    %72 = arith.index_cast %71 : i32 to index
    %73 = memref.load %arg2[%c0_19, %72] : memref<4x4xi32, #tpu.memory_space<smem>>
    %c1_20 = arith.constant 1 : index
    %74 = arith.index_cast %71 : i32 to index
    %75 = memref.load %arg2[%c1_20, %74] : memref<4x4xi32, #tpu.memory_space<smem>>
    %c2_21 = arith.constant 2 : index
    %76 = arith.index_cast %71 : i32 to index
    %77 = memref.load %arg2[%c2_21, %76] : memref<4x4xi32, #tpu.memory_space<smem>>
    %c3_22 = arith.constant 3 : index
    %78 = arith.index_cast %71 : i32 to index
    %79 = memref.load %arg2[%c3_22, %78] : memref<4x4xi32, #tpu.memory_space<smem>>
    %80 = vector.broadcast %73 : i32 to vector<1x128xi32>
    %81 = arith.cmpi sge, %4, %80 : vector<1x128xi32>
    %82 = arith.addi %73, %75 : i32
    %83 = vector.broadcast %82 : i32 to vector<1x128xi32>
    %84 = arith.cmpi slt, %4, %83 : vector<1x128xi32>
    %85 = arith.andi %81, %84 : vector<1x128xi1>
    %86 = vector.broadcast %77 : i32 to vector<16x1xi32>
    %87 = arith.cmpi sge, %5, %86 : vector<16x1xi32>
    %88 = arith.addi %77, %79 : i32
    %89 = vector.broadcast %88 : i32 to vector<16x1xi32>
    %90 = arith.cmpi slt, %5, %89 : vector<16x1xi32>
    %91 = arith.andi %87, %90 : vector<16x1xi1>
    %92 = vector.broadcast %85 : vector<1x128xi1> to vector<16x128xi1>
    %93 = vector.broadcast %91 : vector<16x1xi1> to vector<16x128xi1>
    %94 = arith.ori %92, %93 : vector<16x128xi1>
    %c2_23 = arith.constant 2 : index
    %c0_24 = arith.constant 0 : index
    %c0_25 = arith.constant 0 : index
    %95 = vector.load %arg3[%c2_23, %c0_24, %c0_25] : memref<4x16x128xf32, #tpu.memory_space<vmem>>, vector<1x16x128xf32>
    %96 = vector.shape_cast %95 : vector<1x16x128xf32> to vector<16x128xf32>
    %cst_26 = arith.constant 0.000000e+00 : f32
    %97 = vector.broadcast %cst_26 : f32 to vector<16x128xf32>
    %98 = arith.select %94, %97, %96 : vector<16x128xi1>, vector<16x128xf32>
    %c2_27 = arith.constant 2 : index
    %c0_28 = arith.constant 0 : index
    %c0_29 = arith.constant 0 : index
    %99 = vector.load %arg4[%c2_27, %c0_28, %c0_29] : memref<4x16x128xf32, #tpu.memory_space<vmem>>, vector<1x16x128xf32>
    %100 = vector.shape_cast %99 : vector<1x16x128xf32> to vector<16x128xf32>
    %101 = vector.shape_cast %98 : vector<16x128xf32> to vector<1x16x128xf32>
    tpu.vector_store %arg4[%c2_27, %c0_28, %c0_29], %101 {strides = array<i32>} : memref<4x16x128xf32, #tpu.memory_space<vmem>>, vector<1x16x128xf32>,
    %c3_i32_30 = arith.constant 3 : i32
    %102 = arith.addi %0, %c3_i32_30 : i32
    %c3_i32_31 = arith.constant 3 : i32
    %103 = arith.minsi %102, %c3_i32_31 : i32
    %c0_32 = arith.constant 0 : index
    %104 = arith.index_cast %103 : i32 to index
    %105 = memref.load %arg2[%c0_32, %104] : memref<4x4xi32, #tpu.memory_space<smem>>
    %c1_33 = arith.constant 1 : index
    %106 = arith.index_cast %103 : i32 to index
    %107 = memref.load %arg2[%c1_33, %106] : memref<4x4xi32, #tpu.memory_space<smem>>
    %c2_34 = arith.constant 2 : index
    %108 = arith.index_cast %103 : i32 to index
    %109 = memref.load %arg2[%c2_34, %108] : memref<4x4xi32, #tpu.memory_space<smem>>
    %c3_35 = arith.constant 3 : index
    %110 = arith.index_cast %103 : i32 to index
    %111 = memref.load %arg2[%c3_35, %110] : memref<4x4xi32, #tpu.memory_space<smem>>
    %112 = vector.broadcast %105 : i32 to vector<1x128xi32>
    %113 = arith.cmpi sge, %4, %112 : vector<1x128xi32>
    %114 = arith.addi %105, %107 : i32
    %115 = vector.broadcast %114 : i32 to vector<1x128xi32>
    %116 = arith.cmpi slt, %4, %115 : vector<1x128xi32>
    %117 = arith.andi %113, %116 : vector<1x128xi1>
    %118 = vector.broadcast %109 : i32 to vector<16x1xi32>
    %119 = arith.cmpi sge, %5, %118 : vector<16x1xi32>
    %120 = arith.addi %109, %111 : i32
    %121 = vector.broadcast %120 : i32 to vector<16x1xi32>
    %122 = arith.cmpi slt, %5, %121 : vector<16x1xi32>
    %123 = arith.andi %119, %122 : vector<16x1xi1>
    %124 = vector.broadcast %117 : vector<1x128xi1> to vector<16x128xi1>
    %125 = vector.broadcast %123 : vector<16x1xi1> to vector<16x128xi1>
    %126 = arith.ori %124, %125 : vector<16x128xi1>
    %c3_36 = arith.constant 3 : index
    %c0_37 = arith.constant 0 : index
    %c0_38 = arith.constant 0 : index
    %127 = vector.load %arg3[%c3_36, %c0_37, %c0_38] : memref<4x16x128xf32, #tpu.memory_space<vmem>>, vector<1x16x128xf32>
    %128 = vector.shape_cast %127 : vector<1x16x128xf32> to vector<16x128xf32>
    %cst_39 = arith.constant 0.000000e+00 : f32
    %129 = vector.broadcast %cst_39 : f32 to vector<16x128xf32>
    %130 = arith.select %126, %129, %128 : vector<16x128xi1>, vector<16x128xf32>
    %c3_40 = arith.constant 3 : index
    %c0_41 = arith.constant 0 : index
    %c0_42 = arith.constant 0 : index
    %131 = vector.load %arg4[%c3_40, %c0_41, %c0_42] : memref<4x16x128xf32, #tpu.memory_space<vmem>>, vector<1x16x128xf32>
    %132 = vector.shape_cast %131 : vector<1x16x128xf32> to vector<16x128xf32>
    %133 = vector.shape_cast %130 : vector<16x128xf32> to vector<1x16x128xf32>
    tpu.vector_store %arg4[%c3_40, %c0_41, %c0_42], %133 {strides = array<i32>} : memref<4x16x128xf32, #tpu.memory_space<vmem>>, vector<1x16x128xf32>,
    return
  }
  func.func @transform_0(%arg0: i32, %arg1: i32, %arg2: memref<4x4xi32, #tpu.memory_space<smem>>) -> (i32, i32, i32) {
    %c0_i32 = arith.constant 0 : i32
    %c0_i32_0 = arith.constant 0 : i32
    return %arg0, %c0_i32, %arg1 : i32, i32, i32
  }
  func.func @transform_1(%arg0: i32, %arg1: i32, %arg2: memref<4x4xi32, #tpu.memory_space<smem>>) -> (i32, i32, i32) {
    %c0_i32 = arith.constant 0 : i32
    %c0_i32_0 = arith.constant 0 : i32
    return %arg0, %c0_i32, %arg1 : i32, i32, i32
  }
}

</mosaic_0001>

<llo_original>
// kernel: fbank_aug.1
$region0: #{fbank_aug.1}
  #allocation0 [shape = 'u32[]', space=smem, size = 0x4, offset = 0x4, fixed_abs, tag = 'smem constant byte address 0x4 - core index']
  #allocation1 [shape = 'u32[144,128]{1,0:T(1,128)}', space=vmem, size = 0x12000, scoped, tag = 'internal scratch']
  #allocation2 [shape = 's32[1]{0}', space=sflag, size = 0x4, scoped, tag = 'scoped memory for fbank_aug.1']
  #allocation3 [shape = 'u8[2048]{0}', space=smem, size = 0x800, scoped, tag = 'prefetched SMEM operand 0']
  %s0 = inlined_call_operand.vmem [shape: s32[4,4], index: 0, kind: input, shape index: {}]
  %s1 = inlined_call_operand.hbm [shape: f32[4,16,200], index: 1, kind: input, shape index: {}]
  %s2 = inlined_call_operand.hbm [shape: f32[4,16,200], index: 2, kind: output, shape index: {}]
  %s3 = sld [smem:[#allocation0]]
  $region41: #{fbank_aug.1} parent=0
    _
  %s5 = ssub.s32 1, %s3
  %s6 = scalar_select 0, %s5, %s3
  %s7 = sshll.u32 %s0, 4
  %s8 = int_to_ptr.vmem [resolvable:$true] %s7
  %10 = dma.vmem_to_smem %s8, 64, [#allocation3], [#allocation2]
  %11 = dma.done [#allocation2], 64
  %12 = sfence
  $region1: #{fbank_aug.1} parent=0
    #allocation4 [shape = 'u8[65536]{0}', space=vmem, size = 0x10000, scoped, tag = 'input window, operand 1']
    #allocation5 [shape = 's32[2]{0}', space=sflag, size = 0x8, scoped, tag = 'scoped memory for fbank_aug.1']
    #allocation6 [shape = 's32[2]{0}', space=sflag, size = 0x8, scoped, tag = 'scoped memory for fbank_aug.1']
    #allocation7 [shape = 'u8[65536]{0}', space=vmem, size = 0x10000, scoped, tag = 'output window, operand 0']
    %13 = vsyncpa [#allocation5], 0
    %s14 = scalar_lea.sflag [#allocation5], 1
    %15 = vsyncpa %s14, 0
    %16 = vsyncpa [#allocation6], 0
    %s17 = scalar_lea.sflag [#allocation6], 1
    %18 = vsyncpa %s17, 0
    loop: start=0, step=1, limit=4
    $region2: #{fbank_aug.1} parent=1 // loop_pre_header
      _
    $region3: #{fbank_aug.1} parent=1 // loop_header
      %s20 = sphi 0, %s24
      %p21 = scmp.ge.s32.totalorder %s20, 4
      %s27 = sphi 0, %s39
      %s28 = sphi 0, %s35
      %s29 = sphi 0, %s27
      %s30 = sphi 0, %s28
      %s31 = sphi 0, %s29
      %s32 = sphi 0, %s30
      %s44 = sphi 0, %s46
      %s47 = sphi 0, %s44
      %s48 = sphi 0, %s47
      %s64 = sphi 0, %s48
      %s72 = sphi 0, %s74
      %s75 = sphi 0, %s72
      %s76 = sphi 0, %s75
      %s92 = sphi 0, %s76
    $region4: #{fbank_aug.1} parent=1 // loop_header_branch
      %23 = sbr.rel (%p21) target = $region8
    $region5: #{fbank_aug.1} parent=1 // loop_body
      %s25 = ssub.s32 %s20, 1
      %s26 = ssub.s32 %s20, 2
      %s33 = sadd.s32 1, %s28
      %p34 = scmp.ge.s32.totalorder %s33, 2
      %s35 = scalar_select %p34, 0, %s33
      %s36 = sadd.s32 1, %s27
      %s37 = scalar_select %p34, %s36, %s27
      %p38 = scmp.ge.s32.totalorder %s37, 1
      %s39 = scalar_select %p38, 0, %s37
      %s40 = ssub.s32 %s27, %s39
      %s41 = ssub.s32 %s28, %s35
      %s42 = sor.u32 %s40, %s41
      %p43 = scmp.eq.s32.totalorder %s42, 0
      %s45 = sadd.s32 %s44, 1
      %s46 = scalar_select %p43, %s44, %s45
      %p49 = pneg %p43
      %p50 = scmp.eq.s32.totalorder %s20, 1
      %p51 = por %p49, %p50
      %p52 = scmp.ne.s32.totalorder %s44, %s47
      %p53 = scmp.eq.s32.totalorder %s20, 0
      %p54 = por %p52, %p53
      %p55 = scmp.ne.s32.totalorder %s44, %s47
      %p56 = scmp.eq.s32.totalorder %s25, 1
      %p57 = por %p55, %p56
      %p58 = scmp.ne.s32.totalorder %s47, %s48
      %p59 = scmp.eq.s32.totalorder %s25, 0
      %p60 = por %p58, %p59
      %p61 = scmp.ne.s32.totalorder %s47, %s48
      %p62 = scmp.eq.s32.totalorder %s26, 1
      %p63 = por %p61, %p62
      %p65 = scmp.ne.s32.totalorder %s48, %s64
      %p66 = scmp.eq.s32.totalorder %s26, 0
      %p67 = por %p65, %p66
      %s68 = ssub.s32 %s27, %s39
      %s69 = ssub.s32 %s28, %s35
      %s70 = sor.u32 %s68, %s69
      %p71 = scmp.eq.s32.totalorder %s70, 0
      %s73 = sadd.s32 %s72, 1
      %s74 = scalar_select %p71, %s72, %s73
      %p77 = pneg %p71
      %p78 = scmp.eq.s32.totalorder %s20, 1
      %p79 = por %p77, %p78
      %p80 = scmp.ne.s32.totalorder %s72, %s75
      %p81 = scmp.eq.s32.totalorder %s20, 0
      %p82 = por %p80, %p81
      %p83 = scmp.ne.s32.totalorder %s72, %s75
      %p84 = scmp.eq.s32.totalorder %s25, 1
      %p85 = por %p83, %p84
      %p86 = scmp.ne.s32.totalorder %s75, %s76
      %p87 = scmp.eq.s32.totalorder %s25, 0
      %p88 = por %p86, %p87
      %p89 = scmp.ne.s32.totalorder %s75, %s76
      %p90 = scmp.eq.s32.totalorder %s26, 1
      %p91 = por %p89, %p90
      %p93 = scmp.ne.s32.totalorder %s76, %s92
      %p94 = scmp.eq.s32.totalorder %s26, 0
      %p95 = por %p93, %p94
      %p96 = scmp.le.s32.totalorder 1, %s20
      %p97 = scmp.lt.s32.totalorder %s20, 3
      %p98 = pnand %p96, %p97
      %p99 = pneg %p98
      // Predicated region
      $region9: #{fbank_aug.1} parent=5 // pred_check
        _
      $region10: #{fbank_aug.1} parent=5 // pred_check_branch
        %101 = sbr.rel (%p98) target = $region12
      $region11: #{fbank_aug.1} parent=5 // pred_region
        %s102 = ssub.s32 %s20, 1
      $region12: #{fbank_aug.1} parent=5 // pred_fallthru
        _
      %p103 = scmp.lt.s32.totalorder %s20, 2
      // Predicated region
      $region13: #{fbank_aug.1} parent=5 // pred_check
        %p104 = pneg %p103
      $region14: #{fbank_aug.1} parent=5 // pred_check_branch
        %106 = sbr.rel (%p104) target = $region16
      $region15: #{fbank_aug.1} parent=5 // pred_region
        // Predicated region
        $region17: #{fbank_aug.1} parent=15 // pred_check
          %p107 = pneg %p54
        $region18: #{fbank_aug.1} parent=15 // pred_check_branch
          %109 = sbr.rel (%p107) target = $region20
        $region19: #{fbank_aug.1} parent=15 // pred_region
          %s110 = sand.u32 %s44, 1
          %s111 = scalar_lea.sflag [#allocation5], %s110
          %s112 = sand.u32 %s44, 1
          %s113 = smul.addr %s112, 64
          %s114 = scalar_lea.vmem [#allocation4], %s113
          %s115 = smul.u32 4, %s27
          %s117 = ssub.s32 1024, 1024
          %118 = vsyncadd %s111, %s117
          %s119 = smul.addr %s115, 4
          %s120 = sadd.s32 %s28, %s119
          %s121 = smul.addr %s120, 128
          %s122 = scalar_lea.hbm %s1, %s121
          %s123 = sshll.u32 %s114, 4
          %s124 = int_to_ptr.vmem [resolvable:$true] %s123
          %129 = dma.hbm_to_vmem [thread:$0]  %s122, 1024, %s124, %s111, 256, 128, 8
        $region20: #{fbank_aug.1} parent=15 // pred_fallthru
          _
      $region16: #{fbank_aug.1} parent=5 // pred_fallthru
        _
      %p130 = scmp.le.s32.totalorder 1, %s20
      %p131 = scmp.lt.s32.totalorder %s20, 3
      %p132 = pnand %p130, %p131
      %p133 = pneg %p132
      // Predicated region
      $region21: #{fbank_aug.1} parent=5 // pred_check
        _
      $region22: #{fbank_aug.1} parent=5 // pred_check_branch
        %135 = sbr.rel (%p132) target = $region24
      $region23: #{fbank_aug.1} parent=5 // pred_region
        %s136 = ssub.s32 %s20, 1
        %s137 = sand.u32 %s47, 1
        %s138 = scalar_lea.sflag [#allocation5], %s137
        %s139 = sand.u32 %s47, 1
        %s140 = smul.addr %s139, 64
        %s141 = scalar_lea.vmem [#allocation4], %s140
        // Predicated region
        $region25: #{fbank_aug.1} parent=23 // pred_check
          %p142 = pneg %p60
        $region26: #{fbank_aug.1} parent=23 // pred_check_branch
          %144 = sbr.rel (%p142) target = $region28
        $region27: #{fbank_aug.1} parent=23 // pred_region
          %145 = dma.done %s138, 1024
        $region28: #{fbank_aug.1} parent=23 // pred_fallthru
          _
        %s146 = sand.u32 %s47, 1
        %s147 = scalar_lea.sflag [#allocation5], %s146
        %s148 = sand.u32 %s47, 1
        %s149 = smul.addr %s148, 64
        %s150 = scalar_lea.vmem [#allocation4], %s149
        %p151 = pneg %p60
        %p152 = pneg %p57
        %p153 = pneg %p88
        %p154 = pneg %p85
        %s155 = sand.u32 %s75, 1
        %s156 = scalar_lea.sflag [#allocation6], %s155
        %s157 = sand.u32 %s75, 1
        %s158 = smul.addr %s157, 64
        %s159 = scalar_lea.vmem [#allocation7], %s158
        %s160 = smul.u32 4, %s29
        %s161 = smul.u32 4, %s29
        %s162 = smul.u32 %s29, 4
        %s163 = smul.u32 %s30, 128
        %v164 = vlaneseq
        %v165 = vand.u32 %v164, 127
        %v166 = vstv %s163
        %v167 = vadd.s32 %v166, %v165
        %v168 = vlaneseq
        %v169 = vshrl.u32 %v168, 7
        %v170 = vadd.s32 %v169, 8
        %p171 = scmp.lt.s32.totalorder %s162, 3
        %s172 = scalar_select %p171, %s162, 3
        %s173 = sld [smem:[#allocation3 + %s172]]
        %s174 = sshra.s32 %s172, 7
        %s175 = sand.u32 %s172, 127
        %s176 = sadd.s32 %s174, 1
        %s177 = smul.u32 %s176, 128
        %s178 = sshra.s32 %s172, 7
        %s179 = sand.u32 %s172, 127
        %s180 = sadd.s32 %s177, %s179
        %s181 = sld [smem:[#allocation3 + %s180]]
        %s182 = sadd.s32 %s174, 2
        %s183 = smul.u32 %s182, 128
        %s184 = sadd.s32 %s183, %s179
        %s185 = sld [smem:[#allocation3 + %s184]]
        %s186 = sadd.s32 %s174, 3
        %s187 = smul.u32 %s186, 128
        %s188 = sadd.s32 %s187, %s179
        %s189 = sld [smem:[#allocation3 + %s188]]
        %v190 = vstv %s173
        %vm191 = vcmp.ge.s32.totalorder %v167, %v190
        %s192 = sadd.s32 %s173, %s181
        %v193 = vstv %s192
        %vm194 = vcmp.lt.s32.totalorder %v167, %v193
        %vm195 = vmand %vm191, %vm194
        %v196 = vstv %s185
        %vm197 = vcmp.ge.s32.totalorder %v169, %v196
        %vm198 = vcmp.ge.s32.totalorder %v170, %v196
        %s199 = sadd.s32 %s185, %s189
        %v200 = vstv %s199
        %vm201 = vcmp.lt.s32.totalorder %v169, %v200
        %vm202 = vcmp.lt.s32.totalorder %v170, %v200
        %vm203 = vmand %vm197, %vm201
        %vm204 = vmand %vm198, %vm202
        %v205 = vsel %vm195, 1, 0
        %vm206 = vcmp.eq.s32.totalorder %v205, 1
        %v207 = vsel %vm203, 1, 0
        %v208 = vsel %vm204, 1, 0
        %vm209 = vcmp.eq.s32.totalorder %v207, 1
        %vm210 = vcmp.eq.s32.totalorder %v208, 1
        %vm211 = vmor %vm206, %vm209
        %vm212 = vmor %vm206, %vm210
        %v213 = vld [vmem:[%s141] sm:$0xff]
        %v214 = vld [vmem:[%s141 + $0x8] sm:$0xff]
        %v215 = vsel %vm211, 0.0, %v213
        %v216 = vsel %vm212, 0.0, %v214
        %217 = vst [vmem:[%s159] sm:$0xff] %v215
        %218 = vst [vmem:[%s159 + $0x8] sm:$0xff] %v216
        %s219 = sadd.s32 %s162, 1
        %p220 = scmp.lt.s32.totalorder %s219, 3
        %s221 = scalar_select %p220, %s219, 3
        %s222 = sld [smem:[#allocation3 + %s221]]
        %s223 = sshra.s32 %s221, 7
        %s224 = sand.u32 %s221, 127
        %s225 = sadd.s32 %s223, 1
        %s226 = smul.u32 %s225, 128
        %s227 = sshra.s32 %s221, 7
        %s228 = sand.u32 %s221, 127
        %s229 = sadd.s32 %s226, %s228
        %s230 = sld [smem:[#allocation3 + %s229]]
        %s231 = sadd.s32 %s223, 2
        %s232 = smul.u32 %s231, 128
        %s233 = sadd.s32 %s232, %s228
        %s234 = sld [smem:[#allocation3 + %s233]]
        %s235 = sadd.s32 %s223, 3
        %s236 = smul.u32 %s235, 128
        %s237 = sadd.s32 %s236, %s228
        %s238 = sld [smem:[#allocation3 + %s237]]
        %v239 = vstv %s222
        %vm240 = vcmp.ge.s32.totalorder %v167, %v239
        %s241 = sadd.s32 %s222, %s230
        %v242 = vstv %s241
        %vm243 = vcmp.lt.s32.totalorder %v167, %v242
        %vm244 = vmand %vm240, %vm243
        %v245 = vstv %s234
        %vm246 = vcmp.ge.s32.totalorder %v169, %v245
        %vm247 = vcmp.ge.s32.totalorder %v170, %v245
        %s248 = sadd.s32 %s234, %s238
        %v249 = vstv %s248
        %vm250 = vcmp.lt.s32.totalorder %v169, %v249
        %vm251 = vcmp.lt.s32.totalorder %v170, %v249
        %vm252 = vmand %vm246, %vm250
        %vm253 = vmand %vm247, %vm251
        %v254 = vsel %vm244, 1, 0
        %vm255 = vcmp.eq.s32.totalorder %v254, 1
        %v256 = vsel %vm252, 1, 0
        %v257 = vsel %vm253, 1, 0
        %vm258 = vcmp.eq.s32.totalorder %v256, 1
        %vm259 = vcmp.eq.s32.totalorder %v257, 1
        %vm260 = vmor %vm255, %vm258
        %vm261 = vmor %vm255, %vm259
        %s262 = scalar_lea.vmem %s141, 16 [#allocation4]
        %v263 = vld [vmem:[%s262] sm:$0xff]
        %v264 = vld [vmem:[%s262 + $0x8] sm:$0xff]
        %v265 = vsel %vm260, 0.0, %v263
        %v266 = vsel %vm261, 0.0, %v264
        %s267 = scalar_lea.vmem %s159, 16 [#allocation7]
        %268 = vst [vmem:[%s267] sm:$0xff] %v265
        %269 = vst [vmem:[%s267 + $0x8] sm:$0xff] %v266
        %s270 = sadd.s32 %s162, 2
        %p271 = scmp.lt.s32.totalorder %s270, 3
        %s272 = scalar_select %p271, %s270, 3
        %s273 = sld [smem:[#allocation3 + %s272]]
        %s274 = sshra.s32 %s272, 7
        %s275 = sand.u32 %s272, 127
        %s276 = sadd.s32 %s274, 1
        %s277 = smul.u32 %s276, 128
        %s278 = sshra.s32 %s272, 7
        %s279 = sand.u32 %s272, 127
        %s280 = sadd.s32 %s277, %s279
        %s281 = sld [smem:[#allocation3 + %s280]]
        %s282 = sadd.s32 %s274, 2
        %s283 = smul.u32 %s282, 128
        %s284 = sadd.s32 %s283, %s279
        %s285 = sld [smem:[#allocation3 + %s284]]
        %s286 = sadd.s32 %s274, 3
        %s287 = smul.u32 %s286, 128
        %s288 = sadd.s32 %s287, %s279
        %s289 = sld [smem:[#allocation3 + %s288]]
        %v290 = vstv %s273
        %vm291 = vcmp.ge.s32.totalorder %v167, %v290
        %s292 = sadd.s32 %s273, %s281
        %v293 = vstv %s292
        %vm294 = vcmp.lt.s32.totalorder %v167, %v293
        %vm295 = vmand %vm291, %vm294
        %v296 = vstv %s285
        %vm297 = vcmp.ge.s32.totalorder %v169, %v296
        %vm298 = vcmp.ge.s32.totalorder %v170, %v296
        %s299 = sadd.s32 %s285, %s289
        %v300 = vstv %s299
        %vm301 = vcmp.lt.s32.totalorder %v169, %v300
        %vm302 = vcmp.lt.s32.totalorder %v170, %v300
        %vm303 = vmand %vm297, %vm301
        %vm304 = vmand %vm298, %vm302
        %v305 = vsel %vm295, 1, 0
        %vm306 = vcmp.eq.s32.totalorder %v305, 1
        %v307 = vsel %vm303, 1, 0
        %v308 = vsel %vm304, 1, 0
        %vm309 = vcmp.eq.s32.totalorder %v307, 1
        %vm310 = vcmp.eq.s32.totalorder %v308, 1
        %vm311 = vmor %vm306, %vm309
        %vm312 = vmor %vm306, %vm310
        %s313 = scalar_lea.vmem %s141, 32 [#allocation4]
        %v314 = vld [vmem:[%s313] sm:$0xff]
        %v315 = vld [vmem:[%s313 + $0x8] sm:$0xff]
        %v316 = vsel %vm311, 0.0, %v314
        %v317 = vsel %vm312, 0.0, %v315
        %s318 = scalar_lea.vmem %s159, 32 [#allocation7]
        %319 = vst [vmem:[%s318] sm:$0xff] %v316
        %320 = vst [vmem:[%s318 + $0x8] sm:$0xff] %v317
        %s321 = sadd.s32 %s162, 3
        %p322 = scmp.lt.s32.totalorder %s321, 3
        %s323 = scalar_select %p322, %s321, 3
        %s324 = sld [smem:[#allocation3 + %s323]]
        %s325 = sshra.s32 %s323, 7
        %s326 = sand.u32 %s323, 127
        %s327 = sadd.s32 %s325, 1
        %s328 = smul.u32 %s327, 128
        %s329 = sshra.s32 %s323, 7
        %s330 = sand.u32 %s323, 127
        %s331 = sadd.s32 %s328, %s330
        %s332 = sld [smem:[#allocation3 + %s331]]
        %s333 = sadd.s32 %s325, 2
        %s334 = smul.u32 %s333, 128
        %s335 = sadd.s32 %s334, %s330
        %s336 = sld [smem:[#allocation3 + %s335]]
        %s337 = sadd.s32 %s325, 3
        %s338 = smul.u32 %s337, 128
        %s339 = sadd.s32 %s338, %s330
        %s340 = sld [smem:[#allocation3 + %s339]]
        %v341 = vstv %s324
        %vm342 = vcmp.ge.s32.totalorder %v167, %v341
        %s343 = sadd.s32 %s324, %s332
        %v344 = vstv %s343
        %vm345 = vcmp.lt.s32.totalorder %v167, %v344
        %vm346 = vmand %vm342, %vm345
        %v347 = vstv %s336
        %vm348 = vcmp.ge.s32.totalorder %v169, %v347
        %vm349 = vcmp.ge.s32.totalorder %v170, %v347
        %s350 = sadd.s32 %s336, %s340
        %v351 = vstv %s350
        %vm352 = vcmp.lt.s32.totalorder %v169, %v351
        %vm353 = vcmp.lt.s32.totalorder %v170, %v351
        %vm354 = vmand %vm348, %vm352
        %vm355 = vmand %vm349, %vm353
        %v356 = vsel %vm346, 1, 0
        %vm357 = vcmp.eq.s32.totalorder %v356, 1
        %v358 = vsel %vm354, 1, 0
        %v359 = vsel %vm355, 1, 0
        %vm360 = vcmp.eq.s32.totalorder %v358, 1
        %vm361 = vcmp.eq.s32.totalorder %v359, 1
        %vm362 = vmor %vm357, %vm360
        %vm363 = vmor %vm357, %vm361
        %s364 = scalar_lea.vmem %s141, 48 [#allocation4]
        %v365 = vld [vmem:[%s364] sm:$0xff]
        %v366 = vld [vmem:[%s364 + $0x8] sm:$0xff]
        %v367 = vsel %vm362, 0.0, %v365
        %v368 = vsel %vm363, 0.0, %v366
        %s369 = scalar_lea.vmem %s159, 48 [#allocation7]
        %370 = vst [vmem:[%s369] sm:$0xff] %v367
        %371 = vst [vmem:[%s369 + $0x8] sm:$0xff] %v368
        %s372 = sand.u32 %s75, 1
        %s373 = scalar_lea.sflag [#allocation6], %s372
        %s374 = sand.u32 %s75, 1
        %s375 = smul.addr %s374, 64
        %s376 = scalar_lea.vmem [#allocation7], %s375
        // Predicated region
        $region29: #{fbank_aug.1} parent=23 // pred_check
          %p377 = pneg %p85
        $region30: #{fbank_aug.1} parent=23 // pred_check_branch
          %379 = sbr.rel (%p377) target = $region32
        $region31: #{fbank_aug.1} parent=23 // pred_region
          %s380 = smul.u32 4, %s29
          %s382 = ssub.s32 1024, 1024
          %383 = vsyncadd %s373, %s382
          %s384 = smul.addr %s380, 4
          %s385 = sadd.s32 %s30, %s384
          %s386 = smul.addr %s385, 128
          %s387 = scalar_lea.hbm %s2, %s386
          %s388 = sshll.u32 %s376, 4
          %s389 = int_to_ptr.vmem [resolvable:$true] %s388
          %394 = dma.vmem_to_hbm [thread:$0]  %s389, 1024, %s387, %s373, 128, 256, 8
        $region32: #{fbank_aug.1} parent=23 // pred_fallthru
          _
      $region24: #{fbank_aug.1} parent=5 // pred_fallthru
        _
      %p395 = scmp.le.s32.totalorder 2, %s20
      // Predicated region
      $region33: #{fbank_aug.1} parent=5 // pred_check
        %p396 = pneg %p395
      $region34: #{fbank_aug.1} parent=5 // pred_check_branch
        %398 = sbr.rel (%p396) target = $region36
      $region35: #{fbank_aug.1} parent=5 // pred_region
        %s399 = ssub.s32 %s20, 2
        // Predicated region
        $region37: #{fbank_aug.1} parent=35 // pred_check
          %p400 = pneg %p91
        $region38: #{fbank_aug.1} parent=35 // pred_check_branch
          %402 = sbr.rel (%p400) target = $region40
        $region39: #{fbank_aug.1} parent=35 // pred_region
          %s403 = sand.u32 %s76, 1
          %s404 = scalar_lea.sflag [#allocation6], %s403
          %s405 = sand.u32 %s76, 1
          %s406 = smul.addr %s405, 64
          %s407 = scalar_lea.vmem [#allocation7], %s406
          %408 = dma.done %s404, 1024
        $region40: #{fbank_aug.1} parent=35 // pred_fallthru
          _
      $region36: #{fbank_aug.1} parent=5 // pred_fallthru
        _
    $region6: #{fbank_aug.1} parent=1 // loop_footer
      %s24 = sadd.s32 1, %s20
    $region7: #{fbank_aug.1} parent=1 // loop_footer_branch
      %19 = sbr.rel target = $region3
    $region8: #{fbank_aug.1} parent=1 // loop_exit
      _
    %409 = vsyncpa [#allocation5], 1
    %s410 = scalar_lea.sflag [#allocation5], 1
    %411 = vsyncpa %s410, 1
    %412 = vsyncpa [#allocation6], 1
    %s413 = scalar_lea.sflag [#allocation6], 1
    %414 = vsyncpa %s413, 1

</llo_original>
